<compile_context>
chip_gen: v6e
topology: v6e:2x2x1
jax: 0.10.0
libtpu: 0.0.40
codegen_flags: <defaults>
</compile_context>

<pallas_src>
import functools

import jax
import jax.numpy as jnp
from jax.experimental import pallas as pl
from jax.experimental.pallas import tpu as pltpu


def _round_up(x, m):
    return (x + m - 1) // m * m


def _pick_vmem_limit():
    # v5e/v6e: 128 MiB VMEM per TensorCore, v7x: 64 MiB.  Take ~3/4 of whatever
    # the local chip reports (96 MiB on v5e/v6e, 48 MiB on v7x); fall back to a
    # conservative 48 MiB if the query is unavailable on this host.
    try:
        cap = int(pltpu.get_tpu_info().vmem_capacity_bytes)
        return int(max(32 << 20, min(cap * 3 // 4, 100 << 20)))
    except Exception:
        return 48 << 20


def _fused_conv_ln_mish_kernel(x_ref, w_ref, b_ref, g_ref, beta_ref,
                               segn_ref, segt_ref, o_ref, col_ref, *,
                               k_max, c_in, l_tile, halo, inv_c_out, eps):
    """One (batch, L-tile) step of the fused multi-scale block.

    x_ref   : (1, Lp + halo, C_in)   bf16  whole padded sequence (revisited)
    w_ref   : (k_max*C_in, CO_pad)   bf16  stacked / tap-aligned conv weights
    b_ref   : (1, CO_pad)            f32   stacked conv bias (0 on pad lanes)
    g_ref   : (1, CO_pad)            f32   stacked LN gamma  (0 on pad lanes)
    beta_ref: (1, CO_pad)            f32   stacked LN beta   (0 on pad lanes)
    segn_ref: (CO_pad, NSTAT)        f32   channel -> scale membership
    segt_ref: (NSTAT, CO_pad)        f32   its transpose (broadcast back)
    o_ref   : (1, l_tile, CO_pad)          lane-dense fused output
    col_ref : (l_tile, k_max*C_in)   bf16  im2col scratch (staged once/tile)
    """
    t = pl.program_id(1)
    base = pl.multiple_of(t * l_tile, 16)

    # One aligned VMEM load of the tile window (+halo rows of slack).
    xw = x_ref[0, pl.ds(base, l_tile + halo), :]          # (lt+halo, C_in)

    # Pre-stage the k_max shifted tap views into the im2col scratch ONCE, then
    # run a single matmul with contraction K = k_max*C_in (better MXU fill
    # than k_max separate K=C_in pushes + f32 accumulate adds).
    for dk in range(k_max):
        col_ref[:, dk * c_in:(dk + 1) * c_in] = xw[dk:dk + l_tile, :]
    acc = jnp.dot(col_ref[...], w_ref[...],
                  preferred_element_type=jnp.float32)     # (lt, CO_pad) f32
    acc = acc + b_ref[...]

    # Per-scale LayerNorm in a reduced (lt, NSTAT) stats space (assumes all
    # scales share the same C_out, which the module guarantees).
    segn = segn_ref[...]
    segt = segt_ref[...]
    mean = jnp.dot(acc, segn, preferred_element_type=jnp.float32) * inv_c_out
    mean_b = jnp.dot(mean, segt, preferred_element_type=jnp.float32)
    d = acc - mean_b
    var = jnp.dot(d * d, segn, preferred_element_type=jnp.float32) * inv_c_out
    istd = jax.lax.rsqrt(var + eps)                       # (lt, NSTAT)
    istd_b = jnp.dot(istd, segt, preferred_element_type=jnp.float32)
    y = d * istd_b * g_ref[...] + beta_ref[...]

    # Mish: y*tanh(softplus(y)) == y*(s-1)/(s+1) with s=(1+e^y)^2.
    # One EUP exp + one approx reciprocal; passthrough for y > 20 (matches
    # torch's softplus threshold, and tanh saturates to 1 there anyway).
    e = jnp.exp(jnp.minimum(y, 20.0))
    s = (1.0 + e) * (1.0 + e)
    mish = y * (s - 1.0) * pl.reciprocal(s + 1.0, approx=True)
    o_ref[0] = jnp.where(y > 20.0, y, mish).astype(o_ref.dtype)


def multi_scale_cnn_block(x_ncl, params, kernel_sizes=(3, 5, 7), l_tile=512,
                          out_dtype=None):
    """x_ncl: (B, C_in, L) as in PyTorch Conv1d. Returns (B, n*C_out, L)."""
    B, C_in, L = x_ncl.shape
    n = len(kernel_sizes)
    C_out = params[kernel_sizes[0]][0].shape[0]
    CO = n * C_out
    CO_pad = _round_up(CO, 128)          # lane-dense output stores
    NSTAT = _round_up(n, 8)              # padded per-scale stats columns
    k_max = max(kernel_sizes)
    p_max = (k_max - 1) // 2
    halo = _round_up(2 * p_max, 8)
    K = k_max * C_in
    out_dtype = x_ncl.dtype if out_dtype is None else out_dtype

    # L tiling: multiples of 16 rows (bf16 sublane packing); whole padded
    # sequence stays resident per batch element (see streaming TODO above).
    lt = _round_up(min(l_tile, _round_up(L, 16)), 16)
    Lp = _round_up(L, lt)
    num_lt = Lp // lt

    # --- stack all scales' parameters once; taps of smaller kernels are
    # placed so every scale shares the same k_max-tap / pad=p_max frame, and
    # channels are zero-padded up to CO_pad lanes.
    w2d = jnp.zeros((K, CO_pad), jnp.float32)
    b_stack = jnp.zeros((1, CO_pad), jnp.float32)
    g_stack = jnp.zeros((1, CO_pad), jnp.float32)
    beta_stack = jnp.zeros((1, CO_pad), jnp.float32)
    for s, k in enumerate(kernel_sizes):
        w, b, g, beta = params[k]                         # w: (C_out, C_in, k)
        p = (k - 1) // 2
        w_kio = jnp.transpose(w, (2, 1, 0)).reshape(k * C_in, C_out)
        r0 = (p_max - p) * C_in
        c0 = s * C_out
        w2d = w2d.at[r0:r0 + k * C_in, c0:c0 + C_out].set(w_kio)
        b_stack = b_stack.at[0, c0:c0 + C_out].set(b)
        g_stack = g_stack.at[0, c0:c0 + C_out].set(g)
        beta_stack = beta_stack.at[0, c0:c0 + C_out].set(beta)
    w2d = w2d.astype(jnp.bfloat16)

    # (CO_pad, NSTAT) channel->scale membership; pad channels / pad stat
    # columns get all-zero rows/columns so they never touch real statistics.
    ch = jnp.arange(CO_pad)
    sc = jnp.arange(NSTAT)
    segn = ((ch[:, None] // C_out == sc[None, :])
            & (ch[:, None] < CO) & (sc[None, :] < n)).astype(jnp.float32)
    segt = segn.T

    # NCL -> NLC, pad ONCE (p_max halo left; halo + tile slack right), bf16.
    x_nlc = jnp.transpose(x_ncl, (0, 2, 1))
    x_pad = jnp.pad(x_nlc, ((0, 0), (p_max, Lp - L + halo - p_max), (0, 0)))
    x_pad = x_pad.astype(jnp.bfloat16)                    # (B, Lp+halo, C_in)

    kernel = functools.partial(
        _fused_conv_ln_mish_kernel, k_max=k_max, c_in=C_in, l_tile=lt,
        halo=halo, inv_c_out=1.0 / C_out, eps=1e-5)

    out_nlc = pl.pallas_call(
        kernel,
        out_shape=jax.ShapeDtypeStruct((B, Lp, CO_pad), out_dtype),
        grid=(B, num_lt),
        in_specs=[
            pl.BlockSpec((1, Lp + halo, C_in), lambda b, t: (b, 0, 0)),
            pl.BlockSpec((K, CO_pad), lambda b, t: (0, 0)),
            pl.BlockSpec((1, CO_pad), lambda b, t: (0, 0)),
            pl.BlockSpec((1, CO_pad), lambda b, t: (0, 0)),
            pl.BlockSpec((1, CO_pad), lambda b, t: (0, 0)),
            pl.BlockSpec((CO_pad, NSTAT), lambda b, t: (0, 0)),
            pl.BlockSpec((NSTAT, CO_pad), lambda b, t: (0, 0)),
        ],
        out_specs=pl.BlockSpec((1, lt, CO_pad), lambda b, t: (b, t, 0)),
        scratch_shapes=[pltpu.VMEM((lt, K), jnp.bfloat16)],
        compiler_params=pltpu.CompilerParams(
            dimension_semantics=("parallel", "arbitrary"),
            vmem_limit_bytes=_pick_vmem_limit()),
    )(x_pad, w2d, b_stack, g_stack, beta_stack, segn, segt)

    out_nlc = out_nlc[:, :L, :CO]                         # drop L / lane pad
    return jnp.transpose(out_nlc, (0, 2, 1))              # (B, n*C_out, L)


def _reference(x_ncl, params, kernel_sizes=(3, 5, 7)):
    """Pure-JAX f32 reference mirroring the PyTorch forward."""
    outs = []
    for k in kernel_sizes:
        w, b, g, beta = params[k]
        pad = (k - 1) // 2
        conv = jax.lax.conv_general_dilated(
            x_ncl, w, window_strides=(1,), padding=[(pad, pad)],
            dimension_numbers=("NCH", "OIH", "NCH"),
        ) + b[None, :, None]
        y = jnp.transpose(conv, (0, 2, 1))                # (B, L, C_out)
        mean = jnp.mean(y, axis=-1, keepdims=True)
        var = jnp.mean((y - mean) ** 2, axis=-1, keepdims=True)
        y = (y - mean) / jnp.sqrt(var + 1e-5) * g + beta
        y = jnp.transpose(y, (0, 2, 1))                   # (B, C_out, L)
        sp = jnp.where(y > 20.0, y, jnp.log1p(jnp.exp(jnp.minimum(y, 20.0))))
        outs.append(y * jnp.tanh(sp))
    return jnp.concatenate(outs, axis=1)


if __name__ == "__main__":
    B, C_in, C_out, L = 2, 4, 8, 16
    kernel_sizes = (3, 5, 7)

    key = jax.random.PRNGKey(0)
    key, kx = jax.random.split(key)
    x = jax.random.normal(kx, (B, C_in, L), jnp.float32)

    params = {}
    for k in kernel_sizes:
        key, kw, kb, kg, kbt = jax.random.split(key, 5)
        w = jax.random.normal(kw, (C_out, C_in, k), jnp.float32) * 0.2
        b = jax.random.normal(kb, (C_out,), jnp.float32) * 0.1
        g = 1.0 + 0.1 * jax.random.normal(kg, (C_out,), jnp.float32)
        beta = 0.1 * jax.random.normal(kbt, (C_out,), jnp.float32)
        params[k] = (w, b, g, beta)

    out = jax.block_until_ready(multi_scale_cnn_block(x, params, kernel_sizes))
    assert out.shape == (B, len(kernel_sizes) * C_out, L), out.shape
    ref = jax.block_until_ready(_reference(x, params, kernel_sizes))
    err = float(jnp.max(jnp.abs(out - ref)))
    assert err < 8e-2, err   # bf16 matmul operands -> loosened tolerance

    # Exercise the multi-L-tile + output-slicing path (L not tile-aligned).
    key, kx2 = jax.random.split(key)
    L2 = 44
    x2 = jax.random.normal(kx2, (B, C_in, L2), jnp.float32)
    out2 = jax.block_until_ready(
        multi_scale_cnn_block(x2, params, kernel_sizes, l_tile=16))
    assert out2.shape == (B, len(kernel_sizes) * C_out, L2), out2.shape
    ref2 = jax.block_until_ready(_reference(x2, params, kernel_sizes))
    err2 = float(jnp.max(jnp.abs(out2 - ref2)))
    assert err2 < 8e-2, err2

    print("KERNEL_OK")
</pallas_src>

<mosaic_0001>
module attributes {stable_mosaic.version = 11 : i64} {
  func.func @_fused_conv_ln_mish_kernel(%arg0: i32, %arg1: i32, %arg2: memref<1x24x4xbf16, #tpu.memory_space<vmem>>, %arg3: memref<28x128xbf16, #tpu.memory_space<vmem>>, %arg4: memref<1x128xf32, #tpu.memory_space<vmem>>, %arg5: memref<1x128xf32, #tpu.memory_space<vmem>>, %arg6: memref<1x128xf32, #tpu.memory_space<vmem>>, %arg7: memref<128x8xf32, #tpu.memory_space<vmem>>, %arg8: memref<8x128xf32, #tpu.memory_space<vmem>>, %arg9: memref<1x16x128xf32, #tpu.memory_space<vmem>>, %arg10: memref<16x28xbf16, #tpu.memory_space<vmem>>) attributes {dimension_semantics = [#tpu.dimension_semantics<parallel>, #tpu.dimension_semantics<arbitrary>], iteration_bounds = array<i64: 2, 1>, scalar_prefetch = 0 : i64, scratch_operands = 1 : i64, tpu.core_type = #tpu.core_type<tc>, window_params = [{transform_indices = @transform_0, window_bounds = array<i64: 1, 24, 4>}, {pipeline_mode = #tpu.pipeline_mode<synchronous>, transform_indices = @transform_1, window_bounds = array<i64: 28, 128>}, {pipeline_mode = #tpu.pipeline_mode<synchronous>, transform_indices = @transform_2, window_bounds = array<i64: 1, 128>}, {pipeline_mode = #tpu.pipeline_mode<synchronous>, transform_indices = @transform_3, window_bounds = array<i64: 1, 128>}, {pipeline_mode = #tpu.pipeline_mode<synchronous>, transform_indices = @transform_4, window_bounds = array<i64: 1, 128>}, {pipeline_mode = #tpu.pipeline_mode<synchronous>, transform_indices = @transform_5, window_bounds = array<i64: 128, 8>}, {pipeline_mode = #tpu.pipeline_mode<synchronous>, transform_indices = @transform_6, window_bounds = array<i64: 8, 128>}, {transform_indices = @transform_7, window_bounds = array<i64: 1, 16, 128>}]} {
    %c16_i32 = arith.constant 16 : i32
    %0 = arith.muli %arg1, %c16_i32 : i32
    %1 = tpu.assume_multiple %0, 16 : i32
    %c0 = arith.constant 0 : index
    %2 = arith.index_cast %1 : i32 to index
    %c0_0 = arith.constant 0 : index
    %3 = vector.load %arg2[%c0, %2, %c0_0] : memref<1x24x4xbf16, #tpu.memory_space<vmem>>, vector<1x24x4xbf16>
    %4 = vector.shape_cast %3 : vector<1x24x4xbf16> to vector<24x4xbf16>
    %5 = vector.extract_strided_slice %4 {offsets = [0, 0], sizes = [16, 4], strides = [1, 1]} : vector<24x4xbf16> to vector<16x4xbf16>
    %c0_1 = arith.constant 0 : index
    %c0_2 = arith.constant 0 : index
    %6 = vector.load %arg10[%c0_1, %c0_2] : memref<16x28xbf16, #tpu.memory_space<vmem>>, vector<16x4xbf16>
    tpu.vector_store %arg10[%c0_1, %c0_2], %5 {strides = array<i32>} : memref<16x28xbf16, #tpu.memory_space<vmem>>, vector<16x4xbf16>,
    %7 = vector.extract_strided_slice %4 {offsets = [1, 0], sizes = [16, 4], strides = [1, 1]} : vector<24x4xbf16> to vector<16x4xbf16>
    %c0_3 = arith.constant 0 : index
    %c4 = arith.constant 4 : index
    %8 = vector.load %arg10[%c0_3, %c4] : memref<16x28xbf16, #tpu.memory_space<vmem>>, vector<16x4xbf16>
    tpu.vector_store %arg10[%c0_3, %c4], %7 {strides = array<i32>} : memref<16x28xbf16, #tpu.memory_space<vmem>>, vector<16x4xbf16>,
    %9 = vector.extract_strided_slice %4 {offsets = [2, 0], sizes = [16, 4], strides = [1, 1]} : vector<24x4xbf16> to vector<16x4xbf16>
    %c0_4 = arith.constant 0 : index
    %c8 = arith.constant 8 : index
    %10 = vector.load %arg10[%c0_4, %c8] : memref<16x28xbf16, #tpu.memory_space<vmem>>, vector<16x4xbf16>
    tpu.vector_store %arg10[%c0_4, %c8], %9 {strides = array<i32>} : memref<16x28xbf16, #tpu.memory_space<vmem>>, vector<16x4xbf16>,
    %11 = vector.extract_strided_slice %4 {offsets = [3, 0], sizes = [16, 4], strides = [1, 1]} : vector<24x4xbf16> to vector<16x4xbf16>
    %c0_5 = arith.constant 0 : index
    %c12 = arith.constant 12 : index
    %12 = vector.load %arg10[%c0_5, %c12] : memref<16x28xbf16, #tpu.memory_space<vmem>>, vector<16x4xbf16>
    tpu.vector_store %arg10[%c0_5, %c12], %11 {strides = array<i32>} : memref<16x28xbf16, #tpu.memory_space<vmem>>, vector<16x4xbf16>,
    %13 = vector.extract_strided_slice %4 {offsets = [4, 0], sizes = [16, 4], strides = [1, 1]} : vector<24x4xbf16> to vector<16x4xbf16>
    %c0_6 = arith.constant 0 : index
    %c16 = arith.constant 16 : index
    %14 = vector.load %arg10[%c0_6, %c16] : memref<16x28xbf16, #tpu.memory_space<vmem>>, vector<16x4xbf16>
    tpu.vector_store %arg10[%c0_6, %c16], %13 {strides = array<i32>} : memref<16x28xbf16, #tpu.memory_space<vmem>>, vector<16x4xbf16>,
    %15 = vector.extract_strided_slice %4 {offsets = [5, 0], sizes = [16, 4], strides = [1, 1]} : vector<24x4xbf16> to vector<16x4xbf16>
    %c0_7 = arith.constant 0 : index
    %c20 = arith.constant 20 : index
    %16 = vector.load %arg10[%c0_7, %c20] : memref<16x28xbf16, #tpu.memory_space<vmem>>, vector<16x4xbf16>
    tpu.vector_store %arg10[%c0_7, %c20], %15 {strides = array<i32>} : memref<16x28xbf16, #tpu.memory_space<vmem>>, vector<16x4xbf16>,
    %17 = vector.extract_strided_slice %4 {offsets = [6, 0], sizes = [16, 4], strides = [1, 1]} : vector<24x4xbf16> to vector<16x4xbf16>
    %c0_8 = arith.constant 0 : index
    %c24 = arith.constant 24 : index
    %18 = vector.load %arg10[%c0_8, %c24] : memref<16x28xbf16, #tpu.memory_space<vmem>>, vector<16x4xbf16>
    tpu.vector_store %arg10[%c0_8, %c24], %17 {strides = array<i32>} : memref<16x28xbf16, #tpu.memory_space<vmem>>, vector<16x4xbf16>,
    %c0_9 = arith.constant 0 : index
    %c0_10 = arith.constant 0 : index
    %19 = vector.load %arg10[%c0_9, %c0_10] : memref<16x28xbf16, #tpu.memory_space<vmem>>, vector<16x28xbf16>
    %c0_11 = arith.constant 0 : index
    %c0_12 = arith.constant 0 : index
    %20 = vector.load %arg3[%c0_11, %c0_12] : memref<28x128xbf16, #tpu.memory_space<vmem>>, vector<28x128xbf16>
    %cst = arith.constant dense<0.000000e+00> : vector<16x128xf32>
    %21 = tpu.matmul %19, %20, %cst {dimension_numbers = #tpu.dot_dimension_numbers<[1], [0], [0], [1], [0, 0, 1, 1], [], []>} : vector<16x28xbf16>, vector<28x128xbf16>, vector<16x128xf32> -> vector<16x128xf32>
    %c0_13 = arith.constant 0 : index
    %c0_14 = arith.constant 0 : index
    %22 = vector.load %arg4[%c0_13, %c0_14] : memref<1x128xf32, #tpu.memory_space<vmem>>, vector<1x128xf32>
    %23 = vector.broadcast %22 : vector<1x128xf32> to vector<16x128xf32>
    %24 = arith.addf %21, %23 : vector<16x128xf32>
    %c0_15 = arith.constant 0 : index
    %c0_16 = arith.constant 0 : index
    %25 = vector.load %arg7[%c0_15, %c0_16] : memref<128x8xf32, #tpu.memory_space<vmem>>, vector<128x8xf32>
    %c0_17 = arith.constant 0 : index
    %c0_18 = arith.constant 0 : index
    %26 = vector.load %arg8[%c0_17, %c0_18] : memref<8x128xf32, #tpu.memory_space<vmem>>, vector<8x128xf32>
    %cst_19 = arith.constant dense<0.000000e+00> : vector<16x8xf32>
    %27 = tpu.matmul %24, %25, %cst_19 {dimension_numbers = #tpu.dot_dimension_numbers<[1], [0], [0], [1], [0, 0, 1, 1], [], []>} : vector<16x128xf32>, vector<128x8xf32>, vector<16x8xf32> -> vector<16x8xf32>
    %cst_20 = arith.constant 1.250000e-01 : f32
    %28 = vector.broadcast %cst_20 : f32 to vector<16x8xf32>
    %29 = arith.mulf %27, %28 : vector<16x8xf32>
    %cst_21 = arith.constant dense<0.000000e+00> : vector<16x128xf32>
    %30 = tpu.matmul %29, %26, %cst_21 {dimension_numbers = #tpu.dot_dimension_numbers<[1], [0], [0], [1], [0, 0, 1, 1], [], []>} : vector<16x8xf32>, vector<8x128xf32>, vector<16x128xf32> -> vector<16x128xf32>
    %31 = arith.subf %24, %30 : vector<16x128xf32>
    %32 = arith.mulf %31, %31 : vector<16x128xf32>
    %cst_22 = arith.constant dense<0.000000e+00> : vector<16x8xf32>
    %33 = tpu.matmul %32, %25, %cst_22 {dimension_numbers = #tpu.dot_dimension_numbers<[1], [0], [0], [1], [0, 0, 1, 1], [], []>} : vector<16x128xf32>, vector<128x8xf32>, vector<16x8xf32> -> vector<16x8xf32>
    %cst_23 = arith.constant 1.250000e-01 : f32
    %34 = vector.broadcast %cst_23 : f32 to vector<16x8xf32>
    %35 = arith.mulf %33, %34 : vector<16x8xf32>
    %cst_24 = arith.constant 9.99999974E-6 : f32
    %36 = vector.broadcast %cst_24 : f32 to vector<16x8xf32>
    %37 = arith.addf %35, %36 : vector<16x8xf32>
    %38 = math.rsqrt %37 : vector<16x8xf32>
    %cst_25 = arith.constant dense<0.000000e+00> : vector<16x128xf32>
    %39 = tpu.matmul %38, %26, %cst_25 {dimension_numbers = #tpu.dot_dimension_numbers<[1], [0], [0], [1], [0, 0, 1, 1], [], []>} : vector<16x8xf32>, vector<8x128xf32>, vector<16x128xf32> -> vector<16x128xf32>
    %40 = arith.mulf %31, %39 : vector<16x128xf32>
    %c0_26 = arith.constant 0 : index
    %c0_27 = arith.constant 0 : index
    %41 = vector.load %arg5[%c0_26, %c0_27] : memref<1x128xf32, #tpu.memory_space<vmem>>, vector<1x128xf32>
    %42 = vector.broadcast %41 : vector<1x128xf32> to vector<16x128xf32>
    %43 = arith.mulf %40, %42 : vector<16x128xf32>
    %c0_28 = arith.constant 0 : index
    %c0_29 = arith.constant 0 : index
    %44 = vector.load %arg6[%c0_28, %c0_29] : memref<1x128xf32, #tpu.memory_space<vmem>>, vector<1x128xf32>
    %45 = vector.broadcast %44 : vector<1x128xf32> to vector<16x128xf32>
    %46 = arith.addf %43, %45 : vector<16x128xf32>
    %cst_30 = arith.constant 2.000000e+01 : f32
    %47 = vector.broadcast %cst_30 : f32 to vector<16x128xf32>
    %48 = arith.minimumf %46, %47 : vector<16x128xf32>
    %49 = math.exp %48 : vector<16x128xf32>
    %cst_31 = arith.constant 1.000000e+00 : f32
    %50 = vector.broadcast %cst_31 : f32 to vector<16x128xf32>
    %51 = arith.addf %50, %49 : vector<16x128xf32>
    %cst_32 = arith.constant 1.000000e+00 : f32
    %52 = vector.broadcast %cst_32 : f32 to vector<16x128xf32>
    %53 = arith.addf %52, %49 : vector<16x128xf32>
    %54 = arith.mulf %51, %53 : vector<16x128xf32>
    %cst_33 = arith.constant 1.000000e+00 : f32
    %55 = vector.broadcast %cst_33 : f32 to vector<16x128xf32>
    %56 = arith.subf %54, %55 : vector<16x128xf32>
    %57 = arith.mulf %46, %56 : vector<16x128xf32>
    %cst_34 = arith.constant 1.000000e+00 : f32
    %58 = vector.broadcast %cst_34 : f32 to vector<16x128xf32>
    %59 = arith.addf %54, %58 : vector<16x128xf32>
    %60 = tpu.reciprocal %59 {approx = true} : vector<16x128xf32> -> vector<16x128xf32>
    %61 = arith.mulf %57, %60 : vector<16x128xf32>
    %cst_35 = arith.constant 2.000000e+01 : f32
    %62 = vector.broadcast %cst_35 : f32 to vector<16x128xf32>
    %63 = arith.cmpf ogt, %46, %62 : vector<16x128xf32>
    %64 = arith.select %63, %46, %61 : vector<16x128xi1>, vector<16x128xf32>
    %c0_36 = arith.constant 0 : index
    %c0_37 = arith.constant 0 : index
    %c0_38 = arith.constant 0 : index
    %65 = vector.load %arg9[%c0_36, %c0_37, %c0_38] : memref<1x16x128xf32, #tpu.memory_space<vmem>>, vector<1x16x128xf32>
    %66 = vector.shape_cast %65 : vector<1x16x128xf32> to vector<16x128xf32>
    %67 = vector.shape_cast %64 : vector<16x128xf32> to vector<1x16x128xf32>
    tpu.vector_store %arg9[%c0_36, %c0_37, %c0_38], %67 {strides = array<i32>} : memref<1x16x128xf32, #tpu.memory_space<vmem>>, vector<1x16x128xf32>,
    return
  }
  func.func @transform_0(%arg0: i32, %arg1: i32) -> (i32, i32, i32) {
    %c0_i32 = arith.constant 0 : i32
    %c0_i32_0 = arith.constant 0 : i32
    %c0_i32_1 = arith.constant 0 : i32
    return %arg0, %c0_i32, %c0_i32_0 : i32, i32, i32
  }
  func.func @transform_1(%arg0: i32, %arg1: i32) -> (i32, i32) {
    %c0_i32 = arith.constant 0 : i32
    %c0_i32_0 = arith.constant 0 : i32
    %c0_i32_1 = arith.constant 0 : i32
    return %c0_i32, %c0_i32_0 : i32, i32
  }
  func.func @transform_2(%arg0: i32, %arg1: i32) -> (i32, i32) {
    %c0_i32 = arith.constant 0 : i32
    %c0_i32_0 = arith.constant 0 : i32
    %c0_i32_1 = arith.constant 0 : i32
    return %c0_i32, %c0_i32_0 : i32, i32
  }
  func.func @transform_3(%arg0: i32, %arg1: i32) -> (i32, i32) {
    %c0_i32 = arith.constant 0 : i32
    %c0_i32_0 = arith.constant 0 : i32
    %c0_i32_1 = arith.constant 0 : i32
    return %c0_i32, %c0_i32_0 : i32, i32
  }
  func.func @transform_4(%arg0: i32, %arg1: i32) -> (i32, i32) {
    %c0_i32 = arith.constant 0 : i32
    %c0_i32_0 = arith.constant 0 : i32
    %c0_i32_1 = arith.constant 0 : i32
    return %c0_i32, %c0_i32_0 : i32, i32
  }
  func.func @transform_5(%arg0: i32, %arg1: i32) -> (i32, i32) {
    %c0_i32 = arith.constant 0 : i32
    %c0_i32_0 = arith.constant 0 : i32
    %c0_i32_1 = arith.constant 0 : i32
    return %c0_i32, %c0_i32_0 : i32, i32
  }
  func.func @transform_6(%arg0: i32, %arg1: i32) -> (i32, i32) {
    %c0_i32 = arith.constant 0 : i32
    %c0_i32_0 = arith.constant 0 : i32
    %c0_i32_1 = arith.constant 0 : i32
    return %c0_i32, %c0_i32_0 : i32, i32
  }
  func.func @transform_7(%arg0: i32, %arg1: i32) -> (i32, i32, i32) {
    %c0_i32 = arith.constant 0 : i32
    %c0_i32_0 = arith.constant 0 : i32
    return %arg0, %arg1, %c0_i32 : i32, i32, i32
  }
}

</mosaic_0001>

<llo_original>
// kernel: tpu_custom_call.1
$region0: #{tpu_custom_call.1}
  #allocation0 [shape = 'u32[]', space=smem, size = 0x4, offset = 0x4, fixed_abs, tag = 'smem constant byte address 0x4 - core index']
  #allocation1 [shape = 'u32[144,128]{1,0:T(1,128)}', space=vmem, size = 0x12000, scoped, tag = 'internal scratch']
  #allocation2 [shape = 'bf16[16,28]{1,0:T(8,128)(2,1)}', space=vmem, size = 0x1000, scoped, tag = 'scratch operand']
  %s0 = inlined_call_operand.vmem [shape: bf16[2,24,4], index: 0, kind: input, shape index: {}]
  %s1 = inlined_call_operand.vmem [shape: bf16[28,128], index: 1, kind: input, shape index: {}]
  %s2 = inlined_call_operand.vmem [shape: f32[1,128], index: 2, kind: input, shape index: {}]
  %s3 = inlined_call_operand.vmem [shape: f32[1,128], index: 3, kind: input, shape index: {}]
  %s4 = inlined_call_operand.vmem [shape: f32[1,128], index: 4, kind: input, shape index: {}]
  %s5 = inlined_call_operand.vmem [shape: f32[128,8], index: 5, kind: input, shape index: {}]
  %s6 = inlined_call_operand.vmem [shape: f32[8,128], index: 6, kind: input, shape index: {}]
  %s7 = inlined_call_operand.hbm [shape: f32[2,16,128], index: 7, kind: output, shape index: {}]
  %s8 = sld [smem:[#allocation0]]
  $region61: #{tpu_custom_call.1} parent=0
    _
  %s10 = ssub.s32 1, %s8
  %s11 = scalar_select 0, %s10, %s8
  $region1: #{tpu_custom_call.1} parent=0
    #allocation3 [shape = 'u8[16384]{0}', space=vmem, size = 0x4000, scoped, tag = 'output window, operand 0']
    #allocation4 [shape = 's32[2]{0}', space=sflag, size = 0x8, scoped, tag = 'scoped memory for tpu_custom_call.1']
    %12 = vsyncpa [#allocation4], 0
    %s13 = scalar_lea.sflag [#allocation4], 1
    %14 = vsyncpa %s13, 0
    loop: start=0, step=1, limit=4
    $region2: #{tpu_custom_call.1} parent=1 // loop_pre_header
      _
    $region3: #{tpu_custom_call.1} parent=1 // loop_header
      %s16 = sphi 0, %s20
      %p17 = scmp.ge.s32.totalorder %s16, 4
      %s23 = sphi 0, %s35
      %s24 = sphi 0, %s31
      %s25 = sphi 0, %s23
      %s26 = sphi 0, %s24
      %s27 = sphi 0, %s25
      %s28 = sphi 0, %s26
      %s38 = sphi 0, %s40
      %s41 = sphi 0, %s38
      %s42 = sphi 0, %s41
      %s58 = sphi 0, %s42
      %s62 = sphi 0, %s62
      %s64 = sphi 0, %s62
      %s65 = sphi 0, %s64
      %s79 = sphi 0, %s65
      %s83 = sphi 0, %s83
      %s85 = sphi 0, %s83
      %s86 = sphi 0, %s85
      %s100 = sphi 0, %s86
      %s104 = sphi 0, %s104
      %s106 = sphi 0, %s104
      %s107 = sphi 0, %s106
      %s121 = sphi 0, %s107
      %s125 = sphi 0, %s125
      %s127 = sphi 0, %s125
      %s128 = sphi 0, %s127
      %s142 = sphi 0, %s128
      %s146 = sphi 0, %s146
      %s148 = sphi 0, %s146
      %s149 = sphi 0, %s148
      %s163 = sphi 0, %s149
      %s167 = sphi 0, %s167
      %s169 = sphi 0, %s167
      %s170 = sphi 0, %s169
      %s184 = sphi 0, %s170
      %s192 = sphi 0, %s194
      %s195 = sphi 0, %s192
      %s196 = sphi 0, %s195
      %s212 = sphi 0, %s196
    $region4: #{tpu_custom_call.1} parent=1 // loop_header_branch
      %19 = sbr.rel (%p17) target = $region8
    $region5: #{tpu_custom_call.1} parent=1 // loop_body
      %s21 = ssub.s32 %s16, 1
      %s22 = ssub.s32 %s16, 2
      %s29 = sadd.s32 1, %s24
      %p30 = scmp.ge.s32.totalorder %s29, 1
      %s31 = scalar_select %p30, 0, %s29
      %s32 = sadd.s32 1, %s23
      %s33 = scalar_select %p30, %s32, %s23
      %p34 = scmp.ge.s32.totalorder %s33, 2
      %s35 = scalar_select %p34, 0, %s33
      %s36 = ssub.s32 %s23, %s35
      %p37 = scmp.eq.s32.totalorder %s36, 0
      %s39 = sadd.s32 %s38, 1
      %s40 = scalar_select %p37, %s38, %s39
      %p43 = pneg %p37
      %p44 = scmp.eq.s32.totalorder %s16, 1
      %p45 = por %p43, %p44
      %p46 = scmp.ne.s32.totalorder %s38, %s41
      %p47 = scmp.eq.s32.totalorder %s16, 0
      %p48 = por %p46, %p47
      %p49 = scmp.ne.s32.totalorder %s38, %s41
      %p50 = scmp.eq.s32.totalorder %s21, 1
      %p51 = por %p49, %p50
      %p52 = scmp.ne.s32.totalorder %s41, %s42
      %p53 = scmp.eq.s32.totalorder %s21, 0
      %p54 = por %p52, %p53
      %p55 = scmp.ne.s32.totalorder %s41, %s42
      %p56 = scmp.eq.s32.totalorder %s22, 1
      %p57 = por %p55, %p56
      %p59 = scmp.ne.s32.totalorder %s42, %s58
      %p60 = scmp.eq.s32.totalorder %s22, 0
      %p61 = por %p59, %p60
      %s63 = sadd.s32 %s62, 1
      %p66 = scmp.eq.s32.totalorder %s16, 1
      %p67 = scmp.ne.s32.totalorder %s62, %s64
      %p68 = scmp.eq.s32.totalorder %s16, 0
      %p69 = por %p67, %p68
      %p70 = scmp.ne.s32.totalorder %s62, %s64
      %p71 = scmp.eq.s32.totalorder %s21, 1
      %p72 = por %p70, %p71
      %p73 = scmp.ne.s32.totalorder %s64, %s65
      %p74 = scmp.eq.s32.totalorder %s21, 0
      %p75 = por %p73, %p74
      %p76 = scmp.ne.s32.totalorder %s64, %s65
      %p77 = scmp.eq.s32.totalorder %s22, 1
      %p78 = por %p76, %p77
      %p80 = scmp.ne.s32.totalorder %s65, %s79
      %p81 = scmp.eq.s32.totalorder %s22, 0
      %p82 = por %p80, %p81
      %s84 = sadd.s32 %s83, 1
      %p87 = scmp.eq.s32.totalorder %s16, 1
      %p88 = scmp.ne.s32.totalorder %s83, %s85
      %p89 = scmp.eq.s32.totalorder %s16, 0
      %p90 = por %p88, %p89
      %p91 = scmp.ne.s32.totalorder %s83, %s85
      %p92 = scmp.eq.s32.totalorder %s21, 1
      %p93 = por %p91, %p92
      %p94 = scmp.ne.s32.totalorder %s85, %s86
      %p95 = scmp.eq.s32.totalorder %s21, 0
      %p96 = por %p94, %p95
      %p97 = scmp.ne.s32.totalorder %s85, %s86
      %p98 = scmp.eq.s32.totalorder %s22, 1
      %p99 = por %p97, %p98
      %p101 = scmp.ne.s32.totalorder %s86, %s100
      %p102 = scmp.eq.s32.totalorder %s22, 0
      %p103 = por %p101, %p102
      %s105 = sadd.s32 %s104, 1
      %p108 = scmp.eq.s32.totalorder %s16, 1
      %p109 = scmp.ne.s32.totalorder %s104, %s106
      %p110 = scmp.eq.s32.totalorder %s16, 0
      %p111 = por %p109, %p110
      %p112 = scmp.ne.s32.totalorder %s104, %s106
      %p113 = scmp.eq.s32.totalorder %s21, 1
      %p114 = por %p112, %p113
      %p115 = scmp.ne.s32.totalorder %s106, %s107
      %p116 = scmp.eq.s32.totalorder %s21, 0
      %p117 = por %p115, %p116
      %p118 = scmp.ne.s32.totalorder %s106, %s107
      %p119 = scmp.eq.s32.totalorder %s22, 1
      %p120 = por %p118, %p119
      %p122 = scmp.ne.s32.totalorder %s107, %s121
      %p123 = scmp.eq.s32.totalorder %s22, 0
      %p124 = por %p122, %p123
      %s126 = sadd.s32 %s125, 1
      %p129 = scmp.eq.s32.totalorder %s16, 1
      %p130 = scmp.ne.s32.totalorder %s125, %s127
      %p131 = scmp.eq.s32.totalorder %s16, 0
      %p132 = por %p130, %p131
      %p133 = scmp.ne.s32.totalorder %s125, %s127
      %p134 = scmp.eq.s32.totalorder %s21, 1
      %p135 = por %p133, %p134
      %p136 = scmp.ne.s32.totalorder %s127, %s128
      %p137 = scmp.eq.s32.totalorder %s21, 0
      %p138 = por %p136, %p137
      %p139 = scmp.ne.s32.totalorder %s127, %s128
      %p140 = scmp.eq.s32.totalorder %s22, 1
      %p141 = por %p139, %p140
      %p143 = scmp.ne.s32.totalorder %s128, %s142
      %p144 = scmp.eq.s32.totalorder %s22, 0
      %p145 = por %p143, %p144
      %s147 = sadd.s32 %s146, 1
      %p150 = scmp.eq.s32.totalorder %s16, 1
      %p151 = scmp.ne.s32.totalorder %s146, %s148
      %p152 = scmp.eq.s32.totalorder %s16, 0
      %p153 = por %p151, %p152
      %p154 = scmp.ne.s32.totalorder %s146, %s148
      %p155 = scmp.eq.s32.totalorder %s21, 1
      %p156 = por %p154, %p155
      %p157 = scmp.ne.s32.totalorder %s148, %s149
      %p158 = scmp.eq.s32.totalorder %s21, 0
      %p159 = por %p157, %p158
      %p160 = scmp.ne.s32.totalorder %s148, %s149
      %p161 = scmp.eq.s32.totalorder %s22, 1
      %p162 = por %p160, %p161
      %p164 = scmp.ne.s32.totalorder %s149, %s163
      %p165 = scmp.eq.s32.totalorder %s22, 0
      %p166 = por %p164, %p165
      %s168 = sadd.s32 %s167, 1
      %p171 = scmp.eq.s32.totalorder %s16, 1
      %p172 = scmp.ne.s32.totalorder %s167, %s169
      %p173 = scmp.eq.s32.totalorder %s16, 0
      %p174 = por %p172, %p173
      %p175 = scmp.ne.s32.totalorder %s167, %s169
      %p176 = scmp.eq.s32.totalorder %s21, 1
      %p177 = por %p175, %p176
      %p178 = scmp.ne.s32.totalorder %s169, %s170
      %p179 = scmp.eq.s32.totalorder %s21, 0
      %p180 = por %p178, %p179
      %p181 = scmp.ne.s32.totalorder %s169, %s170
      %p182 = scmp.eq.s32.totalorder %s22, 1
      %p183 = por %p181, %p182
      %p185 = scmp.ne.s32.totalorder %s170, %s184
      %p186 = scmp.eq.s32.totalorder %s22, 0
      %p187 = por %p185, %p186
      %s188 = ssub.s32 %s23, %s35
      %s189 = ssub.s32 %s24, %s31
      %s190 = sor.u32 %s188, %s189
      %p191 = scmp.eq.s32.totalorder %s190, 0
      %s193 = sadd.s32 %s192, 1
      %s194 = scalar_select %p191, %s192, %s193
      %p197 = pneg %p191
      %p198 = scmp.eq.s32.totalorder %s16, 1
      %p199 = por %p197, %p198
      %p200 = scmp.ne.s32.totalorder %s192, %s195
      %p201 = scmp.eq.s32.totalorder %s16, 0
      %p202 = por %p200, %p201
      %p203 = scmp.ne.s32.totalorder %s192, %s195
      %p204 = scmp.eq.s32.totalorder %s21, 1
      %p205 = por %p203, %p204
      %p206 = scmp.ne.s32.totalorder %s195, %s196
      %p207 = scmp.eq.s32.totalorder %s21, 0
      %p208 = por %p206, %p207
      %p209 = scmp.ne.s32.totalorder %s195, %s196
      %p210 = scmp.eq.s32.totalorder %s22, 1
      %p211 = por %p209, %p210
      %p213 = scmp.ne.s32.totalorder %s196, %s212
      %p214 = scmp.eq.s32.totalorder %s22, 0
      %p215 = por %p213, %p214
      %p216 = scmp.le.s32.totalorder 1, %s16
      %p217 = scmp.lt.s32.totalorder %s16, 3
      %p218 = pnand %p216, %p217
      %p219 = pneg %p218
      // Predicated region
      $region9: #{tpu_custom_call.1} parent=5 // pred_check
        _
      $region10: #{tpu_custom_call.1} parent=5 // pred_check_branch
        %221 = sbr.rel (%p218) target = $region12
      $region11: #{tpu_custom_call.1} parent=5 // pred_region
        %s222 = ssub.s32 %s16, 1
        // Predicated region
        $region13: #{tpu_custom_call.1} parent=11 // pred_check
          %p223 = pneg %p75
        $region14: #{tpu_custom_call.1} parent=11 // pred_check_branch
          %225 = sbr.rel (%p223) target = $region16
        $region15: #{tpu_custom_call.1} parent=11 // pred_region
          _
        $region16: #{tpu_custom_call.1} parent=11 // pred_fallthru
          _
        // Predicated region
        $region17: #{tpu_custom_call.1} parent=11 // pred_check
          %p226 = pneg %p96
        $region18: #{tpu_custom_call.1} parent=11 // pred_check_branch
          %228 = sbr.rel (%p226) target = $region20
        $region19: #{tpu_custom_call.1} parent=11 // pred_region
          _
        $region20: #{tpu_custom_call.1} parent=11 // pred_fallthru
          _
        // Predicated region
        $region21: #{tpu_custom_call.1} parent=11 // pred_check
          %p229 = pneg %p117
        $region22: #{tpu_custom_call.1} parent=11 // pred_check_branch
          %231 = sbr.rel (%p229) target = $region24
        $region23: #{tpu_custom_call.1} parent=11 // pred_region
          _
        $region24: #{tpu_custom_call.1} parent=11 // pred_fallthru
          _
        // Predicated region
        $region25: #{tpu_custom_call.1} parent=11 // pred_check
          %p232 = pneg %p138
        $region26: #{tpu_custom_call.1} parent=11 // pred_check_branch
          %234 = sbr.rel (%p232) target = $region28
        $region27: #{tpu_custom_call.1} parent=11 // pred_region
          _
        $region28: #{tpu_custom_call.1} parent=11 // pred_fallthru
          _
        // Predicated region
        $region29: #{tpu_custom_call.1} parent=11 // pred_check
          %p235 = pneg %p159
        $region30: #{tpu_custom_call.1} parent=11 // pred_check_branch
          %237 = sbr.rel (%p235) target = $region32
        $region31: #{tpu_custom_call.1} parent=11 // pred_region
          _
        $region32: #{tpu_custom_call.1} parent=11 // pred_fallthru
          _
        // Predicated region
        $region33: #{tpu_custom_call.1} parent=11 // pred_check
          %p238 = pneg %p180
        $region34: #{tpu_custom_call.1} parent=11 // pred_check_branch
          %240 = sbr.rel (%p238) target = $region36
        $region35: #{tpu_custom_call.1} parent=11 // pred_region
          _
        $region36: #{tpu_custom_call.1} parent=11 // pred_fallthru
          _
      $region12: #{tpu_custom_call.1} parent=5 // pred_fallthru
        _
      %p241 = scmp.lt.s32.totalorder %s16, 2
      // Predicated region
      $region37: #{tpu_custom_call.1} parent=5 // pred_check
        %p242 = pneg %p241
      $region38: #{tpu_custom_call.1} parent=5 // pred_check_branch
        %244 = sbr.rel (%p242) target = $region40
      $region39: #{tpu_custom_call.1} parent=5 // pred_region
        // Predicated region
        $region41: #{tpu_custom_call.1} parent=39 // pred_check
          %p245 = pneg %p48
        $region42: #{tpu_custom_call.1} parent=39 // pred_check_branch
          %247 = sbr.rel (%p245) target = $region44
        $region43: #{tpu_custom_call.1} parent=39 // pred_region
          %p248 = scmp.lt.s32.totalorder %s23, 1
          %s249 = scalar_select %p248, %s23, 1
          %s250 = smul.addr %s249, 3
          %s251 = smul.addr %s250, 4
          %s252 = scalar_lea.vmem %s0, %s251
        $region44: #{tpu_custom_call.1} parent=39 // pred_fallthru
          _
      $region40: #{tpu_custom_call.1} parent=5 // pred_fallthru
        _
      %p253 = scmp.le.s32.totalorder 1, %s16
      %p254 = scmp.lt.s32.totalorder %s16, 3
      %p255 = pnand %p253, %p254
      %p256 = pneg %p255
      // Predicated region
      $region45: #{tpu_custom_call.1} parent=5 // pred_check
        _
      $region46: #{tpu_custom_call.1} parent=5 // pred_check_branch
        %258 = sbr.rel (%p255) target = $region48
      $region47: #{tpu_custom_call.1} parent=5 // pred_region
        %s259 = ssub.s32 %s16, 1
        %p260 = scmp.lt.s32.totalorder %s25, 1
        %s261 = scalar_select %p260, %s25, 1
        %s262 = smul.addr %s261, 3
        %s263 = smul.addr %s262, 4
        %s264 = scalar_lea.vmem %s0, %s263
        %p265 = pneg %p54
        %p266 = pneg %p51
        %p267 = pneg %p75
        %p268 = pneg %p72
        %p269 = pneg %p96
        %p270 = pneg %p93
        %p271 = pneg %p117
        %p272 = pneg %p114
        %p273 = pneg %p138
        %p274 = pneg %p135
        %p275 = pneg %p159
        %p276 = pneg %p156
        %p277 = pneg %p180
        %p278 = pneg %p177
        %p279 = pneg %p208
        %p280 = pneg %p205
        %s281 = sand.u32 %s195, 1
        %s282 = scalar_lea.sflag [#allocation4], %s281
        %s283 = sand.u32 %s195, 1
        %s284 = smul.addr %s283, 16
        %s285 = scalar_lea.vmem [#allocation3], %s284
        %p286 = scmp.lt.s32.totalorder %s25, 1
        %s287 = scalar_select %p286, %s25, 1
        %s288 = smul.addr %s287, 3
        %s289 = smul.addr %s288, 4
        %s290 = scalar_lea.vmem %s0, %s289
        %s291 = smul.u32 2, %s26
        %s293 = smul.u32 %s26, 16
        %s294 = sshra.s32 %s293, 3
        %s295 = sand.u32 %s293, 7
        %s296 = smul.addr %s294, 4
        %s297 = scalar_lea.vmem %s290, %s296
        %v298 = vld [vmem:[%s297] sm:$0xf]
        %v299 = vld [vmem:[%s297 + $0x4] sm:$0xf]
        %v300 = vld [vmem:[%s297 + $0x8] sm:$0xf]
        %vm301 = vcmask 27648
        %302 = vst.msk [vmem:[#allocation2] sm:$0xf] %vm301, %v298
        %303 = vst.msk [vmem:[#allocation2 + $0x4] sm:$0xf] %vm301, %v299
        %vm304 = vsmask.f32 3328
        %vm305 = vsmask.f32 7440
        %vm306 = vmor %vm304, %vm305
        %v308 = vshrl.u32 %v298, 16
        %v310 = vrot.slane %v308, 4
        %v311 = vshll.u32 %v298, 16
        %v313 = vrot.slane %v311, 5
        %v314 = vor.u32 %v310, %v313
        %v315 = vrot.slane %v314, 4
        %v317 = vshll.u32 %v299, 16
        %v319 = vrot.slane %v317, 5
        %v320 = vsel %vm306, %v315, %v319
        %v321 = vshrl.u32 %v299, 16
        %v323 = vrot.slane %v321, 4
        %v324 = vor.u32 %v323, %v319
        %v325 = vrot.slane %v324, 4
        %v327 = vshll.u32 %v300, 16
        %v329 = vrot.slane %v327, 5
        %v330 = vsel %vm306, %v325, %v329
        %331 = vrot.lane.b32.xlu0 %v320, 4
        %v332 = vpop.permute.xlu0 %331
        %333 = vrot.lane.b32.xlu0 %v330, 4
        %v334 = vpop.permute.xlu0 %333
        %vm337 = vcmask 60448
        %338 = vst.msk [vmem:[#allocation2] sm:$0xf] %vm337, %v332
        %339 = vst.msk [vmem:[#allocation2 + $0x4] sm:$0xf] %vm337, %v334
        %vm343 = vcmask 1042432
        %vm344 = vcmask 1046532
        %vm345 = vmor %vm343, %vm344
        %v346 = vrot.slane %v298, 5
        %v347 = vrot.slane %v346, 4
        %v348 = vrot.slane %v299, 5
        %v349 = vsel %vm345, %v347, %v348
        %v350 = vrot.slane %v348, 4
        %v351 = vrot.slane %v300, 5
        %v352 = vsel %vm345, %v350, %v351
        %353 = vrot.lane.b32.xlu0 %v349, 8
        %v354 = vpop.permute.xlu0 %353
        %355 = vrot.lane.b32.xlu0 %v352, 8
        %v356 = vpop.permute.xlu0 %355
        %vm359 = vcmask 93248
        %360 = vst.msk [vmem:[#allocation2] sm:$0xf] %vm359, %v354
        %361 = vst.msk [vmem:[#allocation2 + $0x4] sm:$0xf] %vm359, %v356
        %vm362 = vsmask.f32 2304
        %vm363 = vsmask.f32 6416
        %vm364 = vmor %vm362, %vm363
        %v365 = vrot.slane %v308, 5
        %v366 = vrot.slane %v311, 6
        %v367 = vor.u32 %v365, %v366
        %v368 = vrot.slane %v367, 4
        %v369 = vrot.slane %v321, 5
        %v370 = vrot.slane %v317, 6
        %v371 = vor.u32 %v369, %v370
        %v372 = vsel %vm364, %v368, %v371
        %v373 = vrot.slane %v371, 4
        %v374 = vshrl.u32 %v300, 16
        %v376 = vrot.slane %v374, 5
        %v377 = vrot.slane %v327, 6
        %v378 = vor.u32 %v376, %v377
        %v379 = vsel %vm364, %v373, %v378
        %380 = vrot.lane.b32.xlu0 %v372, 12
        %v381 = vpop.permute.xlu0 %380
        %382 = vrot.lane.b32.xlu0 %v379, 12
        %v383 = vpop.permute.xlu0 %382
        %vm386 = vcmask 126048
        %387 = vst.msk [vmem:[#allocation2] sm:$0xf] %vm386, %v381
        %388 = vst.msk [vmem:[#allocation2 + $0x4] sm:$0xf] %vm386, %v383
        %vm389 = vcmask 1041408
        %vm390 = vcmask 1045508
        %vm391 = vmor %vm389, %vm390
        %v392 = vrot.slane %v298, 6
        %v393 = vrot.slane %v392, 4
        %v394 = vrot.slane %v299, 6
        %v395 = vsel %vm391, %v393, %v394
        %v396 = vrot.slane %v394, 4
        %v397 = vrot.slane %v300, 6
        %v398 = vsel %vm391, %v396, %v397
        %399 = vrot.lane.b32.xlu0 %v395, 16
        %v400 = vpop.permute.xlu0 %399
        %401 = vrot.lane.b32.xlu0 %v398, 16
        %v402 = vpop.permute.xlu0 %401
        %vm405 = vcmask 158848
        %406 = vst.msk [vmem:[#allocation2] sm:$0xf] %vm405, %v400
        %407 = vst.msk [vmem:[#allocation2 + $0x4] sm:$0xf] %vm405, %v402
        %vm408 = vsmask.f32 1280
        %vm409 = vsmask.f32 5392
        %vm410 = vmor %vm408, %vm409
        %v411 = vrot.slane %v308, 6
        %v412 = vrot.slane %v311, 7
        %v413 = vor.u32 %v411, %v412
        %v414 = vrot.slane %v413, 4
        %v415 = vrot.slane %v321, 6
        %v416 = vrot.slane %v317, 7
        %v417 = vor.u32 %v415, %v416
        %v418 = vsel %vm410, %v414, %v417
        %v419 = vrot.slane %v417, 4
        %v420 = vrot.slane %v374, 6
        %v421 = vrot.slane %v327, 7
        %v422 = vor.u32 %v420, %v421
        %v423 = vsel %vm410, %v419, %v422
        %424 = vrot.lane.b32.xlu0 %v418, 20
        %v425 = vpop.permute.xlu0 %424
        %426 = vrot.lane.b32.xlu0 %v423, 20
        %v427 = vpop.permute.xlu0 %426
        %vm430 = vcmask 191648
        %431 = vst.msk [vmem:[#allocation2] sm:$0xf] %vm430, %v425
        %432 = vst.msk [vmem:[#allocation2 + $0x4] sm:$0xf] %vm430, %v427
        %vm433 = vcmask 1040384
        %vm434 = vcmask 1044484
        %vm435 = vmor %vm433, %vm434
        %v436 = vrot.slane %v298, 7
        %v437 = vrot.slane %v436, 4
        %v438 = vrot.slane %v299, 7
        %v439 = vsel %vm435, %v437, %v438
        %v440 = vrot.slane %v438, 4
        %v441 = vrot.slane %v300, 7
        %v442 = vsel %vm435, %v440, %v441
        %443 = vrot.lane.b32.xlu0 %v439, 24
        %v444 = vpop.permute.xlu0 %443
        %445 = vrot.lane.b32.xlu0 %v442, 24
        %v446 = vpop.permute.xlu0 %445
        %vm449 = vcmask 224448
        %450 = vst.msk [vmem:[#allocation2] sm:$0xf] %vm449, %v444
        %451 = vst.msk [vmem:[#allocation2 + $0x4] sm:$0xf] %vm449, %v446
        %v452 = vld [vmem:[#allocation2] sm:$0xf]
        %v453 = vld [vmem:[#allocation2 + $0x4] sm:$0xf]
        %v454 = vld [vmem:[%s1] sm:$0xf]
        %v455 = vld [vmem:[%s1 + $0x4] sm:$0xf]
        %v456 = vld [vmem:[%s1 + $0x8] sm:$0xf]
        %v457 = vld [vmem:[%s1 + $0xc] sm:$0x3]
        %v458 = vld [vmem:[%s2] sm:$0x1]
        %v460 = vlaneseq
        %v461 = vshrl.u32 %v460, 7
        %v462 = vsub.s32 0, %v461
        %v463 = vrot.slane %v458, %v462
        %v467 = vunpack.c.l.b16 %v452
        %v468 = vunpack.c.l.b16 %v453
        %v469 = vpack.c.b16 %v468, %v467
        %v474 = vunpack.c.l.b16 %v454
        %v475 = vunpack.c.l.b16 %v455
        %v476 = vunpack.c.l.b16 %v456
        %v477 = vunpack.c.l.b16 %v457
        %v478 = vpack.c.b16 %v475, %v474
        %v479 = vpack.c.b16 %v477, %v476
        %vm481 = vcmask 228352
        %v483 = vsel %vm481, %v469, 0
        %vm485 = vcmask 1045504
        %v487 = vsel %vm485, %v479, 0
        %489 = vmatprep.subr.bf16.mxu0 0
        %490 = vmatpush1.bf16.msra.mxu0 0
        %491 = vmatprep.subr.bf16.mxu0 0
        %492 = vmatpush1.bf16.msra.mxu0 0
        %493 = vmatprep.subr.bf16.mxu0 0
        %494 = vmatpush1.bf16.msra.mxu0 0
        %495 = vmatprep.subr.bf16.mxu0 0
        %496 = vmatpush1.bf16.msra.mxu0 0
        %497 = vmatprep.subr.bf16.mxu0 0
        %498 = vmatpush1.bf16.msra.mxu0 0
        %499 = vmatprep.subr.bf16.mxu0 0
        %500 = vmatpush1.bf16.msra.mxu0 0
        %501 = vmatprep.subr.bf16.mxu0 0
        %502 = vmatpush1.bf16.msra.mxu0 %v487
        %503 = vmatprep.subr.bf16.mxu0 0
        %504 = vmatpush1.bf16.msra.mxu0 %v478
        %505 = vmatprep.subr.bf16.mxu0 0
        %506 = vmatpush2.bf16.msra.mxu0 0
        %507 = vmatprep.subr.bf16.mxu0 0
        %508 = vmatpush2.bf16.msra.mxu0 0
        %509 = vmatprep.subr.bf16.mxu0 0
        %510 = vmatpush2.bf16.msra.mxu0 0
        %511 = vmatprep.subr.bf16.mxu0 0
        %512 = vmatpush2.bf16.msra.mxu0 0
        %513 = vmatprep.subr.bf16.mxu0 0
        %514 = vmatpush2.bf16.msra.mxu0 0
        %515 = vmatprep.subr.bf16.mxu0 0
        %516 = vmatpush2.bf16.msra.mxu0 0
        %517 = vmatprep.subr.bf16.mxu0 0
        %518 = vmatpush2.bf16.msra.mxu0 0
        %519 = vmatprep.subr.bf16.mxu0 0
        %520 = vmatpush2.bf16.msra.mxu0 0
        %521 = vmatprep.mubr.bf16.mxu0 0
        %522 = vmatmul.mubr.bf16.gmra.mxu0 %v483
        %v523 = vpop.f32.mrf.mxu0
        %v524 = vadd.f32 %v463, %v523
        %v525 = vpop.f32.mrf.mxu0
        %v526 = vpop.f32.mrf.mxu0
        %v527 = vadd.f32 %v463, %v526
        %v528 = vpop.f32.mrf.mxu0
        %529 = vdwg.mxu0
        %v530 = vld [vmem:[%s5] sm:$0xff]
        %v531 = vld [vmem:[%s5 + $0x8] sm:$0xff]
        %v532 = vld [vmem:[%s5 + $0x10] sm:$0xff]
        %v533 = vld [vmem:[%s5 + $0x18] sm:$0xff]
        %v534 = vld [vmem:[%s5 + $0x20] sm:$0xff]
        %v535 = vld [vmem:[%s5 + $0x28] sm:$0xff]
        %v536 = vld [vmem:[%s5 + $0x30] sm:$0xff]
        %v537 = vld [vmem:[%s5 + $0x38] sm:$0xff]
        %v538 = vld [vmem:[%s5 + $0x40] sm:$0xff]
        %v539 = vld [vmem:[%s5 + $0x48] sm:$0xff]
        %v540 = vld [vmem:[%s5 + $0x50] sm:$0xff]
        %v541 = vld [vmem:[%s5 + $0x58] sm:$0xff]
        %v542 = vld [vmem:[%s5 + $0x60] sm:$0xff]
        %v543 = vld [vmem:[%s5 + $0x68] sm:$0xff]
        %v544 = vld [vmem:[%s5 + $0x70] sm:$0xff]
        %v545 = vld [vmem:[%s5 + $0x78] sm:$0xff]
        %v546 = vld [vmem:[%s6] sm:$0xff]
        %547 = vmatprep.subr.mxu0 0.0
        %548 = vmatpush1.msra.mxu0 %v545
        %549 = vmatprep.subr.mxu0 0.0
        %550 = vmatpush1.msra.mxu0 %v544
        %551 = vmatprep.subr.mxu0 0.0
        %552 = vmatpush1.msra.mxu0 %v543
        %553 = vmatprep.subr.mxu0 0.0
        %554 = vmatpush1.msra.mxu0 %v542
        %555 = vmatprep.subr.mxu0 0.0
        %556 = vmatpush1.msra.mxu0 %v541
        %557 = vmatprep.subr.mxu0 0.0
        %558 = vmatpush1.msra.mxu0 %v540
        %559 = vmatprep.subr.mxu0 0.0
        %560 = vmatpush1.msra.mxu0 %v539
        %561 = vmatprep.subr.mxu0 0.0
        %562 = vmatpush1.msra.mxu0 %v538
        %563 = vmatprep.subr.mxu0 0.0
        %564 = vmatpush1.msra.mxu0 %v537
        %565 = vmatprep.subr.mxu0 0.0
        %566 = vmatpush1.msra.mxu0 %v536
        %567 = vmatprep.subr.mxu0 0.0
        %568 = vmatpush1.msra.mxu0 %v535
        %569 = vmatprep.subr.mxu0 0.0
        %570 = vmatpush1.msra.mxu0 %v534
        %571 = vmatprep.subr.mxu0 0.0
        %572 = vmatpush1.msra.mxu0 %v533
        %573 = vmatprep.subr.mxu0 0.0
        %574 = vmatpush1.msra.mxu0 %v532
        %575 = vmatprep.subr.mxu0 0.0
        %576 = vmatpush1.msra.mxu0 %v531
        %577 = vmatprep.subr.mxu0 0.0
        %578 = vmatpush1.msra.mxu0 %v530
        %579 = vmatprep.subr.mxu0 0.0
        %580 = vmatpush2.msra.mxu0 0.0
        %581 = vmatprep.subr.mxu0 0.0
        %582 = vmatpush2.msra.mxu0 0.0
        %583 = vmatprep.subr.mxu0 0.0
        %584 = vmatpush2.msra.mxu0 0.0
        %585 = vmatprep.subr.mxu0 0.0
        %586 = vmatpush2.msra.mxu0 0.0
        %587 = vmatprep.subr.mxu0 0.0
        %588 = vmatpush2.msra.mxu0 0.0
        %589 = vmatprep.subr.mxu0 0.0
        %590 = vmatpush2.msra.mxu0 0.0
        %591 = vmatprep.subr.mxu0 0.0
        %592 = vmatpush2.msra.mxu0 0.0
        %593 = vmatprep.subr.mxu0 0.0
        %594 = vmatpush2.msra.mxu0 0.0
        %595 = vmatprep.subr.mxu0 0.0
        %596 = vmatpush2.msra.mxu0 0.0
        %597 = vmatprep.subr.mxu0 0.0
        %598 = vmatpush2.msra.mxu0 0.0
        %599 = vmatprep.subr.mxu0 0.0
        %600 = vmatpush2.msra.mxu0 0.0
        %601 = vmatprep.subr.mxu0 0.0
        %602 = vmatpush2.msra.mxu0 0.0
        %603 = vmatprep.subr.mxu0 0.0
        %604 = vmatpush2.msra.mxu0 0.0
        %605 = vmatprep.subr.mxu0 0.0
        %606 = vmatpush2.msra.mxu0 0.0
        %607 = vmatprep.subr.mxu0 0.0
        %608 = vmatpush2.msra.mxu0 0.0
        %609 = vmatprep.subr.mxu0 0.0
        %610 = vmatpush2.msra.mxu0 0.0
        %611 = vmatprep.mubr.f32.mxu0 0.0
        %612 = vmatmul.mubr.f32.gmra.mxu0 %v524
        %v613 = vpop.f32.mrf.mxu0
        %v614 = vadd.f32 0.0, %v613
        %v615 = vpop.f32.mrf.mxu0
        %616 = vmatprep.mubr.f32.mxu0 0.0
        %617 = vmatmul.mubr.f32.gmra.mxu0 %v527
        %v618 = vpop.f32.mrf.mxu0
        %v619 = vadd.f32 0.0, %v618
        %v620 = vpop.f32.mrf.mxu0
        %621 = vdwg.mxu0
        %v622 = vmul.f32 %v614, 0.125
        %v623 = vmul.f32 %v619, 0.125
        %vm624 = vcmask 64512
        %v626 = vsel %vm624, %v622, 0
        %v629 = vsel %vm624, %v623, 0
        %631 = vmatprep.subr.mxu0 0.0
        %632 = vmatpush1.msra.mxu0 0.0
        %633 = vmatprep.subr.mxu0 0.0
        %634 = vmatpush1.msra.mxu0 0.0
        %635 = vmatprep.subr.mxu0 0.0
        %636 = vmatpush1.msra.mxu0 0.0
        %637 = vmatprep.subr.mxu0 0.0
        %638 = vmatpush1.msra.mxu0 0.0
        %639 = vmatprep.subr.mxu0 0.0
        %640 = vmatpush1.msra.mxu0 0.0
        %641 = vmatprep.subr.mxu0 0.0
        %642 = vmatpush1.msra.mxu0 0.0
        %643 = vmatprep.subr.mxu0 0.0
        %644 = vmatpush1.msra.mxu0 0.0
        %645 = vmatprep.subr.mxu0 0.0
        %646 = vmatpush1.msra.mxu0 0.0
        %647 = vmatprep.subr.mxu0 0.0
        %648 = vmatpush1.msra.mxu0 0.0
        %649 = vmatprep.subr.mxu0 0.0
        %650 = vmatpush1.msra.mxu0 0.0
        %651 = vmatprep.subr.mxu0 0.0
        %652 = vmatpush1.msra.mxu0 0.0
        %653 = vmatprep.subr.mxu0 0.0
        %654 = vmatpush1.msra.mxu0 0.0
        %655 = vmatprep.subr.mxu0 0.0
        %656 = vmatpush1.msra.mxu0 0.0
        %657 = vmatprep.subr.mxu0 0.0
        %658 = vmatpush1.msra.mxu0 0.0
        %659 = vmatprep.subr.mxu0 0.0
        %660 = vmatpush1.msra.mxu0 0.0
        %661 = vmatprep.subr.mxu0 0.0
        %662 = vmatpush1.msra.mxu0 %v546
        %663 = vmatprep.subr.mxu0 0.0
        %664 = vmatpush2.msra.mxu0 0.0
        %665 = vmatprep.subr.mxu0 0.0
        %666 = vmatpush2.msra.mxu0 0.0
        %667 = vmatprep.subr.mxu0 0.0
        %668 = vmatpush2.msra.mxu0 0.0
        %669 = vmatprep.subr.mxu0 0.0
        %670 = vmatpush2.msra.mxu0 0.0
        %671 = vmatprep.subr.mxu0 0.0
        %672 = vmatpush2.msra.mxu0 0.0
        %673 = vmatprep.subr.mxu0 0.0
        %674 = vmatpush2.msra.mxu0 0.0
        %675 = vmatprep.subr.mxu0 0.0
        %676 = vmatpush2.msra.mxu0 0.0
        %677 = vmatprep.subr.mxu0 0.0
        %678 = vmatpush2.msra.mxu0 0.0
        %679 = vmatprep.subr.mxu0 0.0
        %680 = vmatpush2.msra.mxu0 0.0
        %681 = vmatprep.subr.mxu0 0.0
        %682 = vmatpush2.msra.mxu0 0.0
        %683 = vmatprep.subr.mxu0 0.0
        %684 = vmatpush2.msra.mxu0 0.0
        %685 = vmatprep.subr.mxu0 0.0
        %686 = vmatpush2.msra.mxu0 0.0
        %687 = vmatprep.subr.mxu0 0.0
        %688 = vmatpush2.msra.mxu0 0.0
        %689 = vmatprep.subr.mxu0 0.0
        %690 = vmatpush2.msra.mxu0 0.0
        %691 = vmatprep.subr.mxu0 0.0
        %692 = vmatpush2.msra.mxu0 0.0
        %693 = vmatprep.subr.mxu0 0.0
        %694 = vmatpush2.msra.mxu0 0.0
        %695 = vmatprep.mubr.f32.mxu0 0.0
        %696 = vmatmul.mubr.f32.gmra.mxu0 %v626
        %v697 = vpop.f32.mrf.mxu0
        %v698 = vadd.f32 0.0, %v697
        %v699 = vpop.f32.mrf.mxu0
        %700 = vmatprep.mubr.f32.mxu0 0.0
        %701 = vmatmul.mubr.f32.gmra.mxu0 %v629
        %v702 = vpop.f32.mrf.mxu0
        %v703 = vadd.f32 0.0, %v702
        %v704 = vpop.f32.mrf.mxu0
        %705 = vdwg.mxu0
        %v706 = vsub.f32 %v524, %v698
        %v707 = vsub.f32 %v527, %v703
        %v708 = vmul.f32 %v706, %v706
        %v709 = vmul.f32 %v707, %v707
        %710 = vmatprep.subr.mxu0 0.0
        %711 = vmatpush1.msra.mxu0 %v545
        %712 = vmatprep.subr.mxu0 0.0
        %713 = vmatpush1.msra.mxu0 %v544
        %714 = vmatprep.subr.mxu0 0.0
        %715 = vmatpush1.msra.mxu0 %v543
        %716 = vmatprep.subr.mxu0 0.0
        %717 = vmatpush1.msra.mxu0 %v542
        %718 = vmatprep.subr.mxu0 0.0
        %719 = vmatpush1.msra.mxu0 %v541
        %720 = vmatprep.subr.mxu0 0.0
        %721 = vmatpush1.msra.mxu0 %v540
        %722 = vmatprep.subr.mxu0 0.0
        %723 = vmatpush1.msra.mxu0 %v539
        %724 = vmatprep.subr.mxu0 0.0
        %725 = vmatpush1.msra.mxu0 %v538
        %726 = vmatprep.subr.mxu0 0.0
        %727 = vmatpush1.msra.mxu0 %v537
        %728 = vmatprep.subr.mxu0 0.0
        %729 = vmatpush1.msra.mxu0 %v536
        %730 = vmatprep.subr.mxu0 0.0
        %731 = vmatpush1.msra.mxu0 %v535
        %732 = vmatprep.subr.mxu0 0.0
        %733 = vmatpush1.msra.mxu0 %v534
        %734 = vmatprep.subr.mxu0 0.0
        %735 = vmatpush1.msra.mxu0 %v533
        %736 = vmatprep.subr.mxu0 0.0
        %737 = vmatpush1.msra.mxu0 %v532
        %738 = vmatprep.subr.mxu0 0.0
        %739 = vmatpush1.msra.mxu0 %v531
        %740 = vmatprep.subr.mxu0 0.0
        %741 = vmatpush1.msra.mxu0 %v530
        %742 = vmatprep.subr.mxu0 0.0
        %743 = vmatpush2.msra.mxu0 0.0
        %744 = vmatprep.subr.mxu0 0.0
        %745 = vmatpush2.msra.mxu0 0.0
        %746 = vmatprep.subr.mxu0 0.0
        %747 = vmatpush2.msra.mxu0 0.0
        %748 = vmatprep.subr.mxu0 0.0
        %749 = vmatpush2.msra.mxu0 0.0
        %750 = vmatprep.subr.mxu0 0.0
        %751 = vmatpush2.msra.mxu0 0.0
        %752 = vmatprep.subr.mxu0 0.0
        %753 = vmatpush2.msra.mxu0 0.0
        %754 = vmatprep.subr.mxu0 0.0
        %755 = vmatpush2.msra.mxu0 0.0
        %756 = vmatprep.subr.mxu0 0.0
        %757 = vmatpush2.msra.mxu0 0.0
        %758 = vmatprep.subr.mxu0 0.0
        %759 = vmatpush2.msra.mxu0 0.0
        %760 = vmatprep.subr.mxu0 0.0
        %761 = vmatpush2.msra.mxu0 0.0
        %762 = vmatprep.subr.mxu0 0.0
        %763 = vmatpush2.msra.mxu0 0.0
        %764 = vmatprep.subr.mxu0 0.0
        %765 = vmatpush2.msra.mxu0 0.0
        %766 = vmatprep.subr.mxu0 0.0
        %767 = vmatpush2.msra.mxu0 0.0
        %768 = vmatprep.subr.mxu0 0.0
        %769 = vmatpush2.msra.mxu0 0.0
        %770 = vmatprep.subr.mxu0 0.0
        %771 = vmatpush2.msra.mxu0 0.0
        %772 = vmatprep.subr.mxu0 0.0
        %773 = vmatpush2.msra.mxu0 0.0
        %774 = vmatprep.mubr.f32.mxu0 0.0
        %775 = vmatmul.mubr.f32.gmra.mxu0 %v708
        %v776 = vpop.f32.mrf.mxu0
        %v777 = vadd.f32 0.0, %v776
        %v778 = vpop.f32.mrf.mxu0
        %779 = vmatprep.mubr.f32.mxu0 0.0
        %780 = vmatmul.mubr.f32.gmra.mxu0 %v709
        %v781 = vpop.f32.mrf.mxu0
        %v782 = vadd.f32 0.0, %v781
        %v783 = vpop.f32.mrf.mxu0
        %784 = vdwg.mxu0
        %v785 = vmul.f32 %v777, 0.125
        %v786 = vmul.f32 %v782, 0.125
        %v787 = vadd.f32 %v785, 1e-05
        %v788 = vadd.f32 %v786, 1e-05
        %v789 = vrsqrt.pop %v787
        %v790 = vrsqrt.pop %v788
        %v792 = vsel %vm624, %v789, 0
        %v795 = vsel %vm624, %v790, 0
        %797 = vmatprep.subr.mxu0 0.0
        %798 = vmatpush1.msra.mxu0 0.0
        %799 = vmatprep.subr.mxu0 0.0
        %800 = vmatpush1.msra.mxu0 0.0
        %801 = vmatprep.subr.mxu0 0.0
        %802 = vmatpush1.msra.mxu0 0.0
        %803 = vmatprep.subr.mxu0 0.0
        %804 = vmatpush1.msra.mxu0 0.0
        %805 = vmatprep.subr.mxu0 0.0
        %806 = vmatpush1.msra.mxu0 0.0
        %807 = vmatprep.subr.mxu0 0.0
        %808 = vmatpush1.msra.mxu0 0.0
        %809 = vmatprep.subr.mxu0 0.0
        %810 = vmatpush1.msra.mxu0 0.0
        %811 = vmatprep.subr.mxu0 0.0
        %812 = vmatpush1.msra.mxu0 0.0
        %813 = vmatprep.subr.mxu0 0.0
        %814 = vmatpush1.msra.mxu0 0.0
        %815 = vmatprep.subr.mxu0 0.0
        %816 = vmatpush1.msra.mxu0 0.0
        %817 = vmatprep.subr.mxu0 0.0
        %818 = vmatpush1.msra.mxu0 0.0
        %819 = vmatprep.subr.mxu0 0.0
        %820 = vmatpush1.msra.mxu0 0.0
        %821 = vmatprep.subr.mxu0 0.0
        %822 = vmatpush1.msra.mxu0 0.0
        %823 = vmatprep.subr.mxu0 0.0
        %824 = vmatpush1.msra.mxu0 0.0
        %825 = vmatprep.subr.mxu0 0.0
        %826 = vmatpush1.msra.mxu0 0.0
        %827 = vmatprep.subr.mxu0 0.0
        %828 = vmatpush1.msra.mxu0 %v546
        %829 = vmatprep.subr.mxu0 0.0
        %830 = vmatpush2.msra.mxu0 0.0
        %831 = vmatprep.subr.mxu0 0.0
        %832 = vmatpush2.msra.mxu0 0.0
        %833 = vmatprep.subr.mxu0 0.0
        %834 = vmatpush2.msra.mxu0 0.0
        %835 = vmatprep.subr.mxu0 0.0
        %836 = vmatpush2.msra.mxu0 0.0
        %837 = vmatprep.subr.mxu0 0.0
        %838 = vmatpush2.msra.mxu0 0.0
        %839 = vmatprep.subr.mxu0 0.0
        %840 = vmatpush2.msra.mxu0 0.0
        %841 = vmatprep.subr.mxu0 0.0
        %842 = vmatpush2.msra.mxu0 0.0
        %843 = vmatprep.subr.mxu0 0.0
        %844 = vmatpush2.msra.mxu0 0.0
        %845 = vmatprep.subr.mxu0 0.0
        %846 = vmatpush2.msra.mxu0 0.0
        %847 = vmatprep.subr.mxu0 0.0
        %848 = vmatpush2.msra.mxu0 0.0
        %849 = vmatprep.subr.mxu0 0.0
        %850 = vmatpush2.msra.mxu0 0.0
        %851 = vmatprep.subr.mxu0 0.0
        %852 = vmatpush2.msra.mxu0 0.0
        %853 = vmatprep.subr.mxu0 0.0
        %854 = vmatpush2.msra.mxu0 0.0
        %855 = vmatprep.subr.mxu0 0.0
        %856 = vmatpush2.msra.mxu0 0.0
        %857 = vmatprep.subr.mxu0 0.0
        %858 = vmatpush2.msra.mxu0 0.0
        %859 = vmatprep.subr.mxu0 0.0
        %860 = vmatpush2.msra.mxu0 0.0
        %861 = vmatprep.mubr.f32.mxu0 0.0
        %862 = vmatmul.mubr.f32.gmra.mxu0 %v792
        %v863 = vpop.f32.mrf.mxu0
        %v864 = vadd.f32 0.0, %v863
        %v865 = vpop.f32.mrf.mxu0
        %866 = vmatprep.mubr.f32.mxu0 0.0
        %867 = vmatmul.mubr.f32.gmra.mxu0 %v795
        %v868 = vpop.f32.mrf.mxu0
        %v869 = vadd.f32 0.0, %v868
        %v870 = vpop.f32.mrf.mxu0
        %871 = vdwg.mxu0
        %v872 = vmul.f32 %v706, %v864
        %v873 = vmul.f32 %v707, %v869
        %v874 = vld [vmem:[%s3] sm:$0x1]
        %v876 = vlaneseq
        %v877 = vshrl.u32 %v876, 7
        %v878 = vsub.s32 0, %v877
        %v879 = vrot.slane %v874, %v878
        %v881 = vmul.f32 %v872, %v879
        %v882 = vmul.f32 %v873, %v879
        %v883 = vld [vmem:[%s4] sm:$0x1]
        %v885 = vlaneseq
        %v886 = vshrl.u32 %v885, 7
        %v887 = vsub.s32 0, %v886
        %v888 = vrot.slane %v883, %v887
        %v890 = vadd.f32 %v881, %v888
        %v891 = vadd.f32 %v882, %v888
        %v892 = vmin.f32 %v890, 20.0
        %v893 = vmin.f32 %v891, 20.0
        %v894 = vmul.f32 %v892, 1.442695
        %v895 = vpow.pop %v894
        %v896 = vmul.f32 %v893, 1.442695
        %v897 = vpow.pop %v896
        %v898 = vadd.f32 %v895, 1.0
        %v899 = vadd.f32 %v897, 1.0
        %v900 = vmul.f32 %v898, %v898
        %v901 = vmul.f32 %v899, %v899
        %v902 = vsub.f32 %v900, 1.0
        %v903 = vsub.f32 %v901, 1.0
        %v904 = vmul.f32 %v890, %v902
        %v905 = vmul.f32 %v891, %v903
        %v906 = vadd.f32 %v900, 1.0
        %v907 = vadd.f32 %v901, 1.0
        %v908 = vrcp.pop %v906
        %v909 = vrcp.pop %v907
        %v910 = vmul.f32 %v904, %v908
        %v911 = vmul.f32 %v905, %v909
        %vm912 = vcmp.gt.f32.partialorder %v890, 20.0
        %vm913 = vcmp.gt.f32.partialorder %v891, 20.0
        %v914 = vsel %vm912, %v890, %v910
        %v915 = vsel %vm913, %v891, %v911
        %916 = vst [vmem:[%s285] sm:$0xff] %v914
        %917 = vst [vmem:[%s285 + $0x8] sm:$0xff] %v915
        %s918 = sand.u32 %s195, 1
        %s919 = scalar_lea.sflag [#allocation4], %s918
        %s920 = sand.u32 %s195, 1
        %s921 = smul.addr %s920, 16
        %s922 = scalar_lea.vmem [#allocation3], %s921
        // Predicated region
        $region49: #{tpu_custom_call.1} parent=47 // pred_check
          %p923 = pneg %p205
        $region50: #{tpu_custom_call.1} parent=47 // pred_check_branch
          %925 = sbr.rel (%p923) target = $region52
        $region51: #{tpu_custom_call.1} parent=47 // pred_region
          %s926 = smul.u32 2, %s26
          %s928 = ssub.s32 256, 256
          %929 = vsyncadd %s919, %s928
          %s930 = smul.addr %s25, 2
          %s931 = sadd.s32 %s926, %s930
          %s932 = smul.addr %s931, 128
          %s933 = scalar_lea.hbm %s7, %s932
          %s934 = sshll.u32 %s922, 4
          %s935 = int_to_ptr.vmem [resolvable:$true] %s934
          %940 = dma.vmem_to_hbm [thread:$0]  %s935, 256, %s933, %s919, 128, 128, 8
        $region52: #{tpu_custom_call.1} parent=47 // pred_fallthru
          _
      $region48: #{tpu_custom_call.1} parent=5 // pred_fallthru
        _
      %p941 = scmp.le.s32.totalorder 2, %s16
      // Predicated region
      $region53: #{tpu_custom_call.1} parent=5 // pred_check
        %p942 = pneg %p941
      $region54: #{tpu_custom_call.1} parent=5 // pred_check_branch
        %944 = sbr.rel (%p942) target = $region56
      $region55: #{tpu_custom_call.1} parent=5 // pred_region
        %s945 = ssub.s32 %s16, 2
        // Predicated region
        $region57: #{tpu_custom_call.1} parent=55 // pred_check
          %p946 = pneg %p211
        $region58: #{tpu_custom_call.1} parent=55 // pred_check_branch
          %948 = sbr.rel (%p946) target = $region60
        $region59: #{tpu_custom_call.1} parent=55 // pred_region
          %s949 = sand.u32 %s196, 1
          %s950 = scalar_lea.sflag [#allocation4], %s949
          %s951 = sand.u32 %s196, 1
          %s952 = smul.addr %s951, 16
          %s953 = scalar_lea.vmem [#allocation3], %s952
          %954 = dma.done %s950, 256
        $region60: #{tpu_custom_call.1} parent=55 // pred_fallthru
          _
      $region56: #{tpu_custom_call.1} parent=5 // pred_fallthru
        _
    $region6: #{tpu_custom_call.1} parent=1 // loop_footer
      %s20 = sadd.s32 1, %s16
    $region7: #{tpu_custom_call.1} parent=1 // loop_footer_branch
      %15 = sbr.rel target = $region3
    $region8: #{tpu_custom_call.1} parent=1 // loop_exit
      _
    %955 = vsyncpa [#allocation4], 1
    %s956 = scalar_lea.sflag [#allocation4], 1
    %957 = vsyncpa %s956, 1

</llo_original>
